<compile_context>
chip_gen: v7x
topology: tpu7x:2x2x1
jax: 0.10.0
libtpu: 0.0.40
codegen_flags: <defaults>
</compile_context>

<pallas_src>
import math
from functools import partial

import jax
import jax.numpy as jnp
from jax.experimental import pallas as pl
from jax.experimental.pallas import tpu as pltpu


# ----------------------------------------------------------------------------
# Kernels
# ----------------------------------------------------------------------------

def _channel_conv_sigmoid(comb, kconv_ref, padbuf, *, k_size, channels):
    """k-tap zero-padded cross-correlation along the channel (sublane) axis,
    done as k shifted multiply-adds on a small zero-padded VMEM scratch,
    followed by sigmoid.  comb: (C, 1) f32 value."""
    pad = (k_size - 1) // 2
    padbuf[...] = jnp.zeros_like(padbuf)
    padbuf[pl.ds(pad, channels), :] = comb
    conv = jnp.zeros((channels, 1), jnp.float32)
    for j in range(k_size):                       # k_size is a Python constant
        conv = conv + kconv_ref[j] * padbuf[pl.ds(j, channels), :]
    return jax.nn.sigmoid(conv)


def _md_fused_kernel(w_ref, kconv_ref, x_ref, o_ref, padbuf,
                     *, k_size, channels, hw_total):
    """Single pass per batch: stats -> conv -> sigmoid -> multiply on a
    resident (C, HW) slab."""
    xv = x_ref[0]                                  # (C, HW) native dtype
    xf = xv.astype(jnp.float32)

    s = jnp.sum(xf, axis=1, keepdims=True)         # (C, 1)
    mx = jnp.max(xf, axis=1, keepdims=True)        # (C, 1)
    avg = s * jnp.float32(1.0 / hw_total)
    # weights already hold 0.5 + sigmoid(w):  comb = (.5+w0)*avg + (.5+w1)*mx
    comb = w_ref[0] * avg + w_ref[1] * mx

    attn = _channel_conv_sigmoid(comb, kconv_ref, padbuf,
                                 k_size=k_size, channels=channels)

    if o_ref.dtype == jnp.float32:
        o_ref[0] = (xf * attn).astype(o_ref.dtype)
    else:
        # bf16/f16: multiply in the native dtype (v6e/v7x VPUs handle it).
        o_ref[0] = xv * attn.astype(xv.dtype)


def _md_stats_kernel(w_ref, kconv_ref, x_ref, attn_ref,
                     sum_acc, max_acc, padbuf,
                     *, k_size, channels, hw_total, hw_tile, needs_mask):
    t = pl.program_id(1)

    xr = x_ref[0].astype(jnp.float32)               # (C, hw_tile)

    @pl.when(t == 0)
    def _init():
        sum_acc[...] = jnp.zeros_like(sum_acc)
        max_acc[...] = jnp.full_like(max_acc, -jnp.inf)

    # Padding (if any) is zeros -> neutral for the sum; mask only the max.
    sum_acc[...] = sum_acc[...] + jnp.sum(xr, axis=1, keepdims=True)
    if needs_mask:
        lane = jax.lax.broadcasted_iota(jnp.int32, (channels, hw_tile), 1)
        valid = (t * hw_tile + lane) < hw_total
        xm = jnp.where(valid, xr, -jnp.inf)
    else:
        xm = xr
    max_acc[...] = jnp.maximum(max_acc[...], jnp.max(xm, axis=1, keepdims=True))

    @pl.when(t == pl.num_programs(1) - 1)
    def _finalize():
        avg = sum_acc[...] * jnp.float32(1.0 / hw_total)   # divide by true HW
        comb = w_ref[0] * avg + w_ref[1] * max_acc[...]    # (C, 1)
        attn = _channel_conv_sigmoid(comb, kconv_ref, padbuf,
                                     k_size=k_size, channels=channels)
        # Lane-dense (replicated) store so pass-1 stores are unmasked.
        attn_ref[0] = jnp.broadcast_to(attn, (channels, 128))


def _md_apply_kernel(attn_ref, x_ref, o_ref):
    a = attn_ref[0][:, 0:1]                         # (C, 1) f32 (lanes replicated)
    xv = x_ref[0]
    if o_ref.dtype == jnp.float32:
        o_ref[0] = (xv.astype(jnp.float32) * a).astype(o_ref.dtype)
    else:
        o_ref[0] = xv * a.astype(xv.dtype)          # native bf16 multiply


# ----------------------------------------------------------------------------
# Wrapper
# ----------------------------------------------------------------------------

_BLOCK_BUDGET = 4 * 1024 * 1024          # ~4 MiB per (C, hw_t) block (two-pass)
_FUSED_SLAB_LIMIT = 8 * 1024 * 1024      # per-batch (C, HW) slab cap for fusion


def _pick_hw_tile(hw_padded, c, itemsize):
    """Largest lane-dense (multiple-of-128) divisor of hw_padded within the
    block budget, keeping >=2 grid steps per batch when possible."""
    divisors = [t for t in range(128, hw_padded + 1, 128) if hw_padded % t == 0]
    good = [t for t in divisors if c * t * itemsize <= _BLOCK_BUDGET]
    if not good:
        return 128
    deep = [t for t in good if hw_padded // t >= 2]
    return max(deep) if deep else max(good)


def _vmem_limit(block_bytes):
    # 2x in + 2x out double-buffered blocks + per-block f32 temp + margin.
    return max(int(5 * block_bytes + (4 << 20)), 16 << 20)


def md_forward(x_nchw, weight2, conv_w, k_size, force_two_pass=False):
    """Pallas implementation of MD.forward. x_nchw: (B, C, H, W)."""
    B, C, H, W = x_nchw.shape
    HW = H * W
    x_flat = x_nchw.reshape(B, C, HW)               # free view of contiguous NCHW
    itemsize = jnp.dtype(x_nchw.dtype).itemsize

    w = jax.nn.sigmoid(weight2.astype(jnp.float32))
    wfold = w + jnp.float32(0.5)                    # fold the 1/2*(avg+max) term
    kconv = conv_w.reshape(k_size).astype(jnp.float32)

    smem_spec = pl.BlockSpec(memory_space=pltpu.MemorySpace.SMEM)

    slab_bytes = C * HW * itemsize
    if slab_bytes <= _FUSED_SLAB_LIMIT and not force_two_pass:
        # ---- Fused single-pass path: 2x|x| HBM traffic, grid=(B,). ----
        out = pl.pallas_call(
            partial(_md_fused_kernel, k_size=k_size, channels=C, hw_total=HW),
            out_shape=jax.ShapeDtypeStruct((B, C, HW), x_nchw.dtype),
            grid=(B,),
            in_specs=[
                smem_spec,                                   # 0.5+sigmoid(w), (2,)
                smem_spec,                                   # conv taps, (k,)
                pl.BlockSpec((1, C, HW), lambda b: (b, 0, 0)),
            ],
            out_specs=pl.BlockSpec((1, C, HW), lambda b: (b, 0, 0)),
            scratch_shapes=[pltpu.VMEM((C + k_size - 1, 1), jnp.float32)],
            compiler_params=pltpu.CompilerParams(
                dimension_semantics=("parallel",),
                vmem_limit_bytes=_vmem_limit(slab_bytes)),
        )(wfold, kconv, x_flat)
        return out.reshape(B, C, H, W)

    # ---- Two-pass path for large per-batch slabs. ----
    HW_pad = pl.cdiv(HW, 128) * 128
    needs_mask = HW_pad != HW
    if needs_mask:
        # Zero padding is neutral for the sum; the max is masked in-kernel.
        x_use = jnp.pad(x_flat, ((0, 0), (0, 0), (0, HW_pad - HW)))
    else:
        x_use = x_flat

    hw_t = _pick_hw_tile(HW_pad, C, itemsize)
    n_t = HW_pad // hw_t
    block_bytes = C * hw_t * itemsize
    vlim = _vmem_limit(block_bytes)

    # Pass 1: per-batch, per-channel pooled stats -> attention (B, C, 128).
    attn = pl.pallas_call(
        partial(_md_stats_kernel, k_size=k_size, channels=C, hw_total=HW,
                hw_tile=hw_t, needs_mask=needs_mask),
        out_shape=jax.ShapeDtypeStruct((B, C, 128), jnp.float32),
        grid=(B, n_t),
        in_specs=[
            smem_spec,
            smem_spec,
            pl.BlockSpec((1, C, hw_t), lambda b, t: (b, 0, t)),
        ],
        out_specs=pl.BlockSpec((1, C, 128), lambda b, t: (b, 0, 0)),
        scratch_shapes=[
            pltpu.VMEM((C, 1), jnp.float32),                  # running sum
            pltpu.VMEM((C, 1), jnp.float32),                  # running max
            pltpu.VMEM((C + k_size - 1, 1), jnp.float32),     # zero-padded comb
        ],
        compiler_params=pltpu.CompilerParams(
            dimension_semantics=("parallel", "arbitrary"),
            vmem_limit_bytes=vlim),
    )(wfold, kconv, x_use)

    # Pass 2: lane-dense broadcast multiply out = x * attn.
    out = pl.pallas_call(
        _md_apply_kernel,
        out_shape=jax.ShapeDtypeStruct((B, C, HW_pad), x_nchw.dtype),
        grid=(B, n_t),
        in_specs=[
            pl.BlockSpec((1, C, 128), lambda b, t: (b, 0, 0)),    # attn (per-b)
            pl.BlockSpec((1, C, hw_t), lambda b, t: (b, 0, t)),   # x tile
        ],
        out_specs=pl.BlockSpec((1, C, hw_t), lambda b, t: (b, 0, t)),
        compiler_params=pltpu.CompilerParams(
            dimension_semantics=("parallel", "parallel"),
            vmem_limit_bytes=vlim),
    )(attn, x_use)

    if needs_mask:
        out = out[:, :, :HW]
    return out.reshape(B, C, H, W)


# ----------------------------------------------------------------------------
# Pure-JAX reference (matches the PyTorch forward exactly)
# ----------------------------------------------------------------------------

def md_reference(x, weight2, conv_w, k_size):
    B, C, H, W = x.shape
    pad = (k_size - 1) // 2
    avg = jnp.mean(x, axis=(2, 3), keepdims=True)            # AdaptiveAvgPool2d(1)
    mx = jnp.max(x, axis=(2, 3), keepdims=True)              # AdaptiveMaxPool2d(1)
    w = jax.nn.sigmoid(weight2)
    comb = 0.5 * (avg + mx) + w[0] * avg + w[1] * mx         # (B, C, 1, 1)
    cc = comb[:, :, 0, 0]                                    # (B, C)
    padded = jnp.pad(cc, ((0, 0), (pad, k_size - 1 - pad)))
    kconv = conv_w.reshape(k_size)
    conv = sum(kconv[j] * padded[:, j:j + C] for j in range(k_size))
    attn = jax.nn.sigmoid(conv)[:, :, None, None]
    return x * attn


if __name__ == "__main__":
    k_size = 3

    key = jax.random.PRNGKey(0)
    kx, kw, kc = jax.random.split(key, 3)

    # Primary small example (fused single-pass path).
    B, C, H, W = 2, 4, 16, 16
    x = jax.random.normal(kx, (B, C, H, W), dtype=jnp.float32)
    weight2 = jax.random.uniform(kw, (2,), dtype=jnp.float32)        # torch.rand(2)
    bound = 1.0 / math.sqrt(k_size)                                  # Conv2d default init
    conv_w = jax.random.uniform(kc, (1, 1, 1, k_size), dtype=jnp.float32,
                                minval=-bound, maxval=bound)

    ref = md_reference(x, weight2, conv_w, k_size)

    out = jax.block_until_ready(md_forward(x, weight2, conv_w, k_size))
    assert out.shape == x.shape and out.dtype == x.dtype
    assert jnp.allclose(out, ref, atol=1e-5, rtol=1e-5), "fused path mismatch"

    # Also exercise the tiled two-pass path (128-aligned HW).
    out2 = jax.block_until_ready(
        md_forward(x, weight2, conv_w, k_size, force_two_pass=True))
    assert jnp.allclose(out2, ref, atol=1e-5, rtol=1e-5), "two-pass mismatch"

    # And the two-pass path with non-128-aligned HW (pad + masked max).
    x3 = jax.random.normal(kx, (1, 8, 10, 10), dtype=jnp.float32)
    ref3 = md_reference(x3, weight2, conv_w, k_size)
    out3 = jax.block_until_ready(
        md_forward(x3, weight2, conv_w, k_size, force_two_pass=True))
    assert out3.shape == x3.shape
    assert jnp.allclose(out3, ref3, atol=1e-5, rtol=1e-5), "padded path mismatch"

    print("KERNEL_OK")
</pallas_src>

<mosaic_0001>
module attributes {stable_mosaic.version = 11 : i64} {
  func.func @_md_fused_kernel(%arg0: i32, %arg1: memref<2xf32, #tpu.memory_space<smem>>, %arg2: memref<3xf32, #tpu.memory_space<smem>>, %arg3: memref<1x4x256xf32, #tpu.memory_space<vmem>>, %arg4: memref<1x4x256xf32, #tpu.memory_space<vmem>>, %arg5: memref<6x1xf32, #tpu.memory_space<vmem>>) attributes {dimension_semantics = [#tpu.dimension_semantics<parallel>], iteration_bounds = array<i64: 2>, scalar_prefetch = 0 : i64, scratch_operands = 1 : i64, tpu.core_type = #tpu.core_type<tc>, window_params = [{transform_indices = @transform_0, window_bounds = array<i64: 2>}, {transform_indices = @transform_1, window_bounds = array<i64: 3>}, {transform_indices = @transform_2, window_bounds = array<i64: 1, 4, 256>}, {transform_indices = @transform_3, window_bounds = array<i64: 1, 4, 256>}]} {
    %c0 = arith.constant 0 : index
    %c0_0 = arith.constant 0 : index
    %c0_1 = arith.constant 0 : index
    %0 = vector.load %arg3[%c0, %c0_0, %c0_1] : memref<1x4x256xf32, #tpu.memory_space<vmem>>, vector<1x4x256xf32>
    %1 = vector.shape_cast %0 : vector<1x4x256xf32> to vector<4x256xf32>
    %cst = arith.constant dense<0.000000e+00> : vector<4xf32>
    %2 = vector.multi_reduction <add>, %1, %cst [1] : vector<4x256xf32> to vector<4xf32>
    %3 = vector.shape_cast %2 : vector<4xf32> to vector<4x1xf32>
    %cst_2 = arith.constant dense<0xFF800000> : vector<4xf32>
    %4 = vector.multi_reduction <maximumf>, %1, %cst_2 [1] : vector<4x256xf32> to vector<4xf32>
    %5 = vector.shape_cast %4 : vector<4xf32> to vector<4x1xf32>
    %cst_3 = arith.constant 3.906250e-03 : f32
    %6 = vector.broadcast %cst_3 : f32 to vector<4x1xf32>
    %7 = arith.mulf %3, %6 : vector<4x1xf32>
    %c0_4 = arith.constant 0 : index
    %8 = memref.load %arg1[%c0_4] : memref<2xf32, #tpu.memory_space<smem>>
    %9 = vector.broadcast %8 : f32 to vector<4x1xf32>
    %10 = arith.mulf %9, %7 : vector<4x1xf32>
    %c1 = arith.constant 1 : index
    %11 = memref.load %arg1[%c1] : memref<2xf32, #tpu.memory_space<smem>>
    %12 = vector.broadcast %11 : f32 to vector<4x1xf32>
    %13 = arith.mulf %12, %5 : vector<4x1xf32>
    %14 = arith.addf %10, %13 : vector<4x1xf32>
    %cst_5 = arith.constant 0.000000e+00 : f32
    %15 = vector.broadcast %cst_5 : f32 to vector<6x1xf32>
    %c0_6 = arith.constant 0 : index
    %c0_7 = arith.constant 0 : index
    %16 = vector.load %arg5[%c0_6, %c0_7] : memref<6x1xf32, #tpu.memory_space<vmem>>, vector<6x1xf32>
    tpu.vector_store %arg5[%c0_6, %c0_7], %15 {strides = array<i32>} : memref<6x1xf32, #tpu.memory_space<vmem>>, vector<6x1xf32>,
    %c1_8 = arith.constant 1 : index
    %c0_9 = arith.constant 0 : index
    %17 = vector.load %arg5[%c1_8, %c0_9] : memref<6x1xf32, #tpu.memory_space<vmem>>, vector<4x1xf32>
    tpu.vector_store %arg5[%c1_8, %c0_9], %14 {strides = array<i32>} : memref<6x1xf32, #tpu.memory_space<vmem>>, vector<4x1xf32>,
    %cst_10 = arith.constant 0.000000e+00 : f32
    %18 = vector.broadcast %cst_10 : f32 to vector<4x1xf32>
    %c0_11 = arith.constant 0 : index
    %19 = memref.load %arg2[%c0_11] : memref<3xf32, #tpu.memory_space<smem>>
    %c0_12 = arith.constant 0 : index
    %c0_13 = arith.constant 0 : index
    %20 = vector.load %arg5[%c0_12, %c0_13] : memref<6x1xf32, #tpu.memory_space<vmem>>, vector<4x1xf32>
    %21 = vector.broadcast %19 : f32 to vector<4x1xf32>
    %22 = arith.mulf %21, %20 : vector<4x1xf32>
    %23 = arith.addf %18, %22 : vector<4x1xf32>
    %c1_14 = arith.constant 1 : index
    %24 = memref.load %arg2[%c1_14] : memref<3xf32, #tpu.memory_space<smem>>
    %c1_15 = arith.constant 1 : index
    %c0_16 = arith.constant 0 : index
    %25 = vector.load %arg5[%c1_15, %c0_16] : memref<6x1xf32, #tpu.memory_space<vmem>>, vector<4x1xf32>
    %26 = vector.broadcast %24 : f32 to vector<4x1xf32>
    %27 = arith.mulf %26, %25 : vector<4x1xf32>
    %28 = arith.addf %23, %27 : vector<4x1xf32>
    %c2 = arith.constant 2 : index
    %29 = memref.load %arg2[%c2] : memref<3xf32, #tpu.memory_space<smem>>
    %c2_17 = arith.constant 2 : index
    %c0_18 = arith.constant 0 : index
    %30 = vector.load %arg5[%c2_17, %c0_18] : memref<6x1xf32, #tpu.memory_space<vmem>>, vector<4x1xf32>
    %31 = vector.broadcast %29 : f32 to vector<4x1xf32>
    %32 = arith.mulf %31, %30 : vector<4x1xf32>
    %33 = arith.addf %28, %32 : vector<4x1xf32>
    %34 = arith.negf %33 : vector<4x1xf32>
    %35 = math.exp %34 : vector<4x1xf32>
    %cst_19 = arith.constant 1.000000e+00 : f32
    %36 = vector.broadcast %cst_19 : f32 to vector<4x1xf32>
    %37 = arith.addf %36, %35 : vector<4x1xf32>
    %38 = arith.divf %36, %37 : vector<4x1xf32>
    %39 = vector.broadcast %38 : vector<4x1xf32> to vector<4x256xf32>
    %40 = arith.mulf %1, %39 : vector<4x256xf32>
    %c0_20 = arith.constant 0 : index
    %c0_21 = arith.constant 0 : index
    %c0_22 = arith.constant 0 : index
    %41 = vector.load %arg4[%c0_20, %c0_21, %c0_22] : memref<1x4x256xf32, #tpu.memory_space<vmem>>, vector<1x4x256xf32>
    %42 = vector.shape_cast %41 : vector<1x4x256xf32> to vector<4x256xf32>
    %43 = vector.shape_cast %40 : vector<4x256xf32> to vector<1x4x256xf32>
    tpu.vector_store %arg4[%c0_20, %c0_21, %c0_22], %43 {strides = array<i32>} : memref<1x4x256xf32, #tpu.memory_space<vmem>>, vector<1x4x256xf32>,
    return
  }
  func.func @transform_0(%arg0: i32) -> i32 {
    %c0_i32 = arith.constant 0 : i32
    %c0_i32_0 = arith.constant 0 : i32
    return %c0_i32 : i32
  }
  func.func @transform_1(%arg0: i32) -> i32 {
    %c0_i32 = arith.constant 0 : i32
    %c0_i32_0 = arith.constant 0 : i32
    return %c0_i32 : i32
  }
  func.func @transform_2(%arg0: i32) -> (i32, i32, i32) {
    %c0_i32 = arith.constant 0 : i32
    %c0_i32_0 = arith.constant 0 : i32
    %c0_i32_1 = arith.constant 0 : i32
    return %arg0, %c0_i32, %c0_i32_0 : i32, i32, i32
  }
  func.func @transform_3(%arg0: i32) -> (i32, i32, i32) {
    %c0_i32 = arith.constant 0 : i32
    %c0_i32_0 = arith.constant 0 : i32
    %c0_i32_1 = arith.constant 0 : i32
    return %arg0, %c0_i32, %c0_i32_0 : i32, i32, i32
  }
}

</mosaic_0001>

<llo_original>
// kernel: tpu_custom_call.1
$region0: #{tpu_custom_call.1}
  #allocation0 [shape = 'u32[]', space=smem, size = 0x4, offset = 0x4, fixed_abs, tag = 'smem constant byte address 0x4 - core index']
  #allocation1 [shape = 'u32[144,128]{1,0:T(1,128)}', space=vmem, size = 0x12000, scoped, tag = 'internal scratch']
  #allocation2 [shape = 'f32[6,1]{1,0:T(8,128)}', space=vmem, size = 0x1000, scoped, tag = 'scratch operand']
  %s0 = inlined_call_operand.hbm [shape: f32[2], index: 0, kind: input, shape index: {}]
  %s1 = inlined_call_operand.vmem [shape: f32[3], index: 1, kind: input, shape index: {}]
  %s2 = inlined_call_operand.hbm [shape: f32[2,4,256], index: 2, kind: input, shape index: {}]
  %s3 = inlined_call_operand.hbm [shape: f32[2,4,256], index: 3, kind: output, shape index: {}]
  %s4 = sld [smem:[#allocation0]]
  $region57: #{tpu_custom_call.1} parent=0
    _
  %s6 = ssub.s32 1, %s4
  %s7 = scalar_select 0, %s6, %s4
  $region1: #{tpu_custom_call.1} parent=0
    #allocation3 [shape = 'u8[512]{0}', space=smem, size = 0x200, scoped, tag = 'input window, operand 0, single buffered']
    #allocation4 [shape = 's32[2]{0}', space=sflag, size = 0x8, scoped, tag = 'scoped memory for tpu_custom_call.1']
    #allocation5 [shape = 's32[2]{0}', space=sflag, size = 0x8, scoped, tag = 'scoped memory for tpu_custom_call.1']
    #allocation6 [shape = 's32[2]{0}', space=sflag, size = 0x8, scoped, tag = 'scoped memory for tpu_custom_call.1']
    #allocation7 [shape = 's32[2]{0}', space=sflag, size = 0x8, scoped, tag = 'scoped memory for tpu_custom_call.1']
    #allocation8 [shape = 'u8[512]{0}', space=smem, size = 0x200, scoped, tag = 'input window, operand 1, single buffered']
    #allocation9 [shape = 'u8[8192]{0}', space=vmem, size = 0x2000, scoped, tag = 'input window, operand 2']
    #allocation10 [shape = 'u8[8192]{0}', space=vmem, size = 0x2000, scoped, tag = 'output window, operand 0']
    %8 = vsyncpa [#allocation6], 0
    %9 = vsyncpa [#allocation7], 0
    %10 = vsyncpa [#allocation4], 0
    %s11 = scalar_lea.sflag [#allocation4], 1
    %12 = vsyncpa %s11, 0
    %13 = vsyncpa [#allocation5], 0
    %s14 = scalar_lea.sflag [#allocation5], 1
    %15 = vsyncpa %s14, 0
    loop: start=0, step=1, limit=4
    $region2: #{tpu_custom_call.1} parent=1 // loop_pre_header
      _
    $region3: #{tpu_custom_call.1} parent=1 // loop_header
      %s17 = sphi 0, %s21
      %p18 = scmp.ge.s32.totalorder %s17, 4
      %s25 = sphi 0, %s25
      %s27 = sphi 0, %s25
      %s28 = sphi 0, %s27
      %s42 = sphi 0, %s28
      %s46 = sphi 0, %s46
      %s48 = sphi 0, %s46
      %s49 = sphi 0, %s48
      %s63 = sphi 0, %s49
      %s69 = sphi 0, %s71
      %s72 = sphi 0, %s69
      %s73 = sphi 0, %s72
      %s89 = sphi 0, %s73
      %s95 = sphi 0, %s97
      %s98 = sphi 0, %s95
      %s99 = sphi 0, %s98
      %s115 = sphi 0, %s99
    $region4: #{tpu_custom_call.1} parent=1 // loop_header_branch
      %20 = sbr.rel (%p18) target = $region8
    $region5: #{tpu_custom_call.1} parent=1 // loop_body
      %s22 = ssub.s32 %s17, 1
      %s23 = ssub.s32 %s17, 2
      %s24 = sadd.s32 %s17, 1
      %s26 = sadd.s32 %s25, 1
      %p29 = scmp.eq.s32.totalorder %s17, 1
      %p30 = scmp.ne.s32.totalorder %s25, %s27
      %p31 = scmp.eq.s32.totalorder %s17, 0
      %p32 = por %p30, %p31
      %p33 = scmp.ne.s32.totalorder %s25, %s27
      %p34 = scmp.eq.s32.totalorder %s22, 1
      %p35 = por %p33, %p34
      %p36 = scmp.ne.s32.totalorder %s27, %s28
      %p37 = scmp.eq.s32.totalorder %s22, 0
      %p38 = por %p36, %p37
      %p39 = scmp.ne.s32.totalorder %s27, %s28
      %p40 = scmp.eq.s32.totalorder %s23, 1
      %p41 = por %p39, %p40
      %p43 = scmp.ne.s32.totalorder %s28, %s42
      %p44 = scmp.eq.s32.totalorder %s23, 0
      %p45 = por %p43, %p44
      %s47 = sadd.s32 %s46, 1
      %p50 = scmp.eq.s32.totalorder %s17, 1
      %p51 = scmp.ne.s32.totalorder %s46, %s48
      %p52 = scmp.eq.s32.totalorder %s17, 0
      %p53 = por %p51, %p52
      %p54 = scmp.ne.s32.totalorder %s46, %s48
      %p55 = scmp.eq.s32.totalorder %s22, 1
      %p56 = por %p54, %p55
      %p57 = scmp.ne.s32.totalorder %s48, %s49
      %p58 = scmp.eq.s32.totalorder %s22, 0
      %p59 = por %p57, %p58
      %p60 = scmp.ne.s32.totalorder %s48, %s49
      %p61 = scmp.eq.s32.totalorder %s23, 1
      %p62 = por %p60, %p61
      %p64 = scmp.ne.s32.totalorder %s49, %s63
      %p65 = scmp.eq.s32.totalorder %s23, 0
      %p66 = por %p64, %p65
      %s67 = ssub.s32 %s17, %s24
      %p68 = scmp.eq.s32.totalorder %s67, 0
      %s70 = sadd.s32 %s69, 1
      %s71 = scalar_select %p68, %s69, %s70
      %p74 = pneg %p68
      %p75 = scmp.eq.s32.totalorder %s17, 1
      %p76 = por %p74, %p75
      %p77 = scmp.ne.s32.totalorder %s69, %s72
      %p78 = scmp.eq.s32.totalorder %s17, 0
      %p79 = por %p77, %p78
      %p80 = scmp.ne.s32.totalorder %s69, %s72
      %p81 = scmp.eq.s32.totalorder %s22, 1
      %p82 = por %p80, %p81
      %p83 = scmp.ne.s32.totalorder %s72, %s73
      %p84 = scmp.eq.s32.totalorder %s22, 0
      %p85 = por %p83, %p84
      %p86 = scmp.ne.s32.totalorder %s72, %s73
      %p87 = scmp.eq.s32.totalorder %s23, 1
      %p88 = por %p86, %p87
      %p90 = scmp.ne.s32.totalorder %s73, %s89
      %p91 = scmp.eq.s32.totalorder %s23, 0
      %p92 = por %p90, %p91
      %s93 = ssub.s32 %s17, %s24
      %p94 = scmp.eq.s32.totalorder %s93, 0
      %s96 = sadd.s32 %s95, 1
      %s97 = scalar_select %p94, %s95, %s96
      %p100 = pneg %p94
      %p101 = scmp.eq.s32.totalorder %s17, 1
      %p102 = por %p100, %p101
      %p103 = scmp.ne.s32.totalorder %s95, %s98
      %p104 = scmp.eq.s32.totalorder %s17, 0
      %p105 = por %p103, %p104
      %p106 = scmp.ne.s32.totalorder %s95, %s98
      %p107 = scmp.eq.s32.totalorder %s22, 1
      %p108 = por %p106, %p107
      %p109 = scmp.ne.s32.totalorder %s98, %s99
      %p110 = scmp.eq.s32.totalorder %s22, 0
      %p111 = por %p109, %p110
      %p112 = scmp.ne.s32.totalorder %s98, %s99
      %p113 = scmp.eq.s32.totalorder %s23, 1
      %p114 = por %p112, %p113
      %p116 = scmp.ne.s32.totalorder %s99, %s115
      %p117 = scmp.eq.s32.totalorder %s23, 0
      %p118 = por %p116, %p117
      %p119 = scmp.le.s32.totalorder 1, %s17
      %p120 = scmp.lt.s32.totalorder %s17, 3
      %p121 = pnand %p119, %p120
      %p122 = pneg %p121
      // Predicated region
      $region9: #{tpu_custom_call.1} parent=5 // pred_check
        _
      $region10: #{tpu_custom_call.1} parent=5 // pred_check_branch
        %124 = sbr.rel (%p121) target = $region12
      $region11: #{tpu_custom_call.1} parent=5 // pred_region
        %s125 = ssub.s32 %s17, 1
        // Predicated region
        $region13: #{tpu_custom_call.1} parent=11 // pred_check
          %p126 = pneg %p38
        $region14: #{tpu_custom_call.1} parent=11 // pred_check_branch
          %128 = sbr.rel (%p126) target = $region16
        $region15: #{tpu_custom_call.1} parent=11 // pred_region
          %s130 = ssub.s32 16, 16
          %131 = vsyncadd [#allocation6], %s130
          %134 = dma.hbm_to_smem %s0, 16, [#allocation3], [#allocation6]
        $region16: #{tpu_custom_call.1} parent=11 // pred_fallthru
          _
        // Predicated region
        $region17: #{tpu_custom_call.1} parent=11 // pred_check
          %p135 = pneg %p59
        $region18: #{tpu_custom_call.1} parent=11 // pred_check_branch
          %137 = sbr.rel (%p135) target = $region20
        $region19: #{tpu_custom_call.1} parent=11 // pred_region
          %s139 = ssub.s32 16, 16
          %140 = vsyncadd [#allocation7], %s139
          %s142 = sshll.u32 %s1, 4
          %s143 = int_to_ptr.vmem [resolvable:$true] %s142
          %145 = dma.vmem_to_smem %s143, 16, [#allocation8], [#allocation7]
        $region20: #{tpu_custom_call.1} parent=11 // pred_fallthru
          _
      $region12: #{tpu_custom_call.1} parent=5 // pred_fallthru
        _
      %p146 = scmp.lt.s32.totalorder %s17, 2
      // Predicated region
      $region21: #{tpu_custom_call.1} parent=5 // pred_check
        %p147 = pneg %p146
      $region22: #{tpu_custom_call.1} parent=5 // pred_check_branch
        %149 = sbr.rel (%p147) target = $region24
      $region23: #{tpu_custom_call.1} parent=5 // pred_region
        // Predicated region
        $region25: #{tpu_custom_call.1} parent=23 // pred_check
          %p150 = pneg %p79
        $region26: #{tpu_custom_call.1} parent=23 // pred_check_branch
          %152 = sbr.rel (%p150) target = $region28
        $region27: #{tpu_custom_call.1} parent=23 // pred_region
          %s153 = sand.u32 %s69, 1
          %s154 = scalar_lea.sflag [#allocation4], %s153
          %s155 = sand.u32 %s69, 1
          %s156 = smul.addr %s155, 8
          %s157 = scalar_lea.vmem [#allocation9], %s156
          %s159 = ssub.s32 128, 128
          %160 = vsyncadd %s154, %s159
          %s161 = smul.addr %s17, 2
          %s162 = smul.addr %s161, 64
          %s163 = scalar_lea.hbm %s2, %s162
          %s165 = sshll.u32 %s157, 4
          %s166 = int_to_ptr.vmem [resolvable:$true] %s165
          %168 = dma.hbm_to_vmem [thread:$0]  %s163, 128, %s166, %s154
        $region28: #{tpu_custom_call.1} parent=23 // pred_fallthru
          _
      $region24: #{tpu_custom_call.1} parent=5 // pred_fallthru
        _
      %p169 = scmp.le.s32.totalorder 1, %s17
      %p170 = scmp.lt.s32.totalorder %s17, 3
      %p171 = pnand %p169, %p170
      %p172 = pneg %p171
      // Predicated region
      $region29: #{tpu_custom_call.1} parent=5 // pred_check
        _
      $region30: #{tpu_custom_call.1} parent=5 // pred_check_branch
        %174 = sbr.rel (%p171) target = $region32
      $region31: #{tpu_custom_call.1} parent=5 // pred_region
        %s175 = ssub.s32 %s17, 1
        // Predicated region
        $region33: #{tpu_custom_call.1} parent=31 // pred_check
          %p176 = pneg %p38
        $region34: #{tpu_custom_call.1} parent=31 // pred_check_branch
          %178 = sbr.rel (%p176) target = $region36
        $region35: #{tpu_custom_call.1} parent=31 // pred_region
          %179 = dma.done [#allocation6], 16
        $region36: #{tpu_custom_call.1} parent=31 // pred_fallthru
          _
        // Predicated region
        $region37: #{tpu_custom_call.1} parent=31 // pred_check
          %p180 = pneg %p59
        $region38: #{tpu_custom_call.1} parent=31 // pred_check_branch
          %182 = sbr.rel (%p180) target = $region40
        $region39: #{tpu_custom_call.1} parent=31 // pred_region
          %183 = dma.done [#allocation7], 16
        $region40: #{tpu_custom_call.1} parent=31 // pred_fallthru
          _
        %s184 = sand.u32 %s72, 1
        %s185 = scalar_lea.sflag [#allocation4], %s184
        %s186 = sand.u32 %s72, 1
        %s187 = smul.addr %s186, 8
        %s188 = scalar_lea.vmem [#allocation9], %s187
        // Predicated region
        $region41: #{tpu_custom_call.1} parent=31 // pred_check
          %p189 = pneg %p85
        $region42: #{tpu_custom_call.1} parent=31 // pred_check_branch
          %191 = sbr.rel (%p189) target = $region44
        $region43: #{tpu_custom_call.1} parent=31 // pred_region
          %192 = dma.done %s185, 128
        $region44: #{tpu_custom_call.1} parent=31 // pred_fallthru
          _
        %193 = sfence
        %p194 = pneg %p38
        %p195 = pneg %p35
        %p196 = pneg %p59
        %p197 = pneg %p56
        %s198 = sand.u32 %s72, 1
        %s199 = scalar_lea.sflag [#allocation4], %s198
        %s200 = sand.u32 %s72, 1
        %s201 = smul.addr %s200, 8
        %s202 = scalar_lea.vmem [#allocation9], %s201
        %p203 = pneg %p85
        %p204 = pneg %p82
        %p205 = pneg %p111
        %p206 = pneg %p108
        %s207 = sand.u32 %s98, 1
        %s208 = scalar_lea.sflag [#allocation5], %s207
        %s209 = sand.u32 %s98, 1
        %s210 = smul.addr %s209, 8
        %s211 = scalar_lea.vmem [#allocation10], %s210
        %v212 = vld [vmem:[%s188] sm:$0xff]
        %v214 = vcombine.high %v212, %v212
        %vm216 = vcmask 1043456
        %v217 = vsel %vm216, %v212, 0.0
        %v218 = vsel %vm216, %v214, 0.0
        %v219 = vadd.f32 %v217, %v218
        %220 = vadd.xlane.f32.xlu0 %v219
        %v221 = vpop.xlane.xlu0 %220
        %v222 = vsel %vm216, %v212, -inf
        %v223 = vsel %vm216, %v214, -inf
        %v224 = vmax.f32 %v222, %v223
        %225 = vmax.xlane.f32.xlu0 %v224
        %v226 = vpop.xlane.xlu0 %225
        %v227 = vmul.f32 %v221, 0.00390625
        %s228 = sld [smem:[#allocation3]]
        %v229 = vstv %s228
        %v230 = vmul.f32 %v229, %v227
        %s231 = sld [smem:[#allocation3 + $0x1]]
        %v232 = vstv %s231
        %v233 = vmul.f32 %v232, %v226
        %v234 = vadd.f32 %v230, %v233
        %vm235 = vcmask 5120
        %236 = vst.msk [vmem:[#allocation2] sm:$0x3f] %vm235, 0.0
        %vm237 = vcmask 3072
        %238 = vst.msk [vmem:[#allocation2 + $0x1] sm:$0xf] %vm237, %v234
        %s239 = sld [smem:[#allocation8]]
        %v240 = vld [vmem:[#allocation2] sm:$0xf]
        %v241 = vstv %s239
        %v242 = vmul.f32 %v241, %v240
        %v243 = vadd.f32 %v242, 0.0
        %s244 = sld [smem:[#allocation8 + $0x1]]
        %v245 = vld [vmem:[#allocation2 + $0x1] sm:$0xf]
        %v246 = vstv %s244
        %v247 = vmul.f32 %v246, %v245
        %v248 = vadd.f32 %v243, %v247
        %s249 = sld [smem:[#allocation8 + $0x2]]
        %v250 = vld [vmem:[#allocation2 + $0x2] sm:$0xf]
        %v251 = vstv %s249
        %v252 = vmul.f32 %v251, %v250
        %v253 = vadd.f32 %v248, %v252
        %v254 = vxor.u32 %v253, 2147483648
        %v255 = vmul.f32 %v254, 1.442695
        %v256 = vpow.pop %v255
        %v257 = vadd.f32 %v256, 1.0
        %v258 = vrcp.pop %v257
        %v259 = vmul.f32 1.0, %v258
        %261 = vset.pattern.permute.xlu0 0
        %262 = vperm.xlu0 %261, %v259
        %v263 = vpop.permute.xlu0 %262
        %v265 = vunpack.c.l.s4 839922192
        %v266 = vunpack.c.0.s8 %v265
        %v267 = vlaneseq
        %v268 = vshrl.u32 %v267, 7
        %v269 = vsub.s32 %v266, %v268
        %v270 = vrot.slane %v263, %v269
        %v272 = vmul.f32 %v212, %v270
        %273 = vst [vmem:[%s211] sm:$0xff] %v272
        %s274 = sand.u32 %s98, 1
        %s275 = scalar_lea.sflag [#allocation5], %s274
        %s276 = sand.u32 %s98, 1
        %s277 = smul.addr %s276, 8
        %s278 = scalar_lea.vmem [#allocation10], %s277
        // Predicated region
        $region45: #{tpu_custom_call.1} parent=31 // pred_check
          %p279 = pneg %p108
        $region46: #{tpu_custom_call.1} parent=31 // pred_check_branch
          %281 = sbr.rel (%p279) target = $region48
        $region47: #{tpu_custom_call.1} parent=31 // pred_region
          %s283 = ssub.s32 128, 128
          %284 = vsyncadd %s275, %s283
          %s285 = smul.addr %s22, 2
          %s286 = smul.addr %s285, 64
          %s287 = scalar_lea.hbm %s3, %s286
          %s289 = sshll.u32 %s278, 4
          %s290 = int_to_ptr.vmem [resolvable:$true] %s289
          %292 = dma.vmem_to_hbm [thread:$0]  %s290, 128, %s287, %s275
        $region48: #{tpu_custom_call.1} parent=31 // pred_fallthru
          _
      $region32: #{tpu_custom_call.1} parent=5 // pred_fallthru
        _
      %p293 = scmp.le.s32.totalorder 2, %s17
      // Predicated region
      $region49: #{tpu_custom_call.1} parent=5 // pred_check
        %p294 = pneg %p293
      $region50: #{tpu_custom_call.1} parent=5 // pred_check_branch
        %296 = sbr.rel (%p294) target = $region52
      $region51: #{tpu_custom_call.1} parent=5 // pred_region
        %s297 = ssub.s32 %s17, 2
        // Predicated region
        $region53: #{tpu_custom_call.1} parent=51 // pred_check
          %p298 = pneg %p114
        $region54: #{tpu_custom_call.1} parent=51 // pred_check_branch
          %300 = sbr.rel (%p298) target = $region56
        $region55: #{tpu_custom_call.1} parent=51 // pred_region
          %s301 = sand.u32 %s99, 1
          %s302 = scalar_lea.sflag [#allocation5], %s301
          %s303 = sand.u32 %s99, 1
          %s304 = smul.addr %s303, 8
          %s305 = scalar_lea.vmem [#allocation10], %s304
          %306 = dma.done %s302, 128
        $region56: #{tpu_custom_call.1} parent=51 // pred_fallthru
          _
      $region52: #{tpu_custom_call.1} parent=5 // pred_fallthru
        _
    $region6: #{tpu_custom_call.1} parent=1 // loop_footer
      %s21 = sadd.s32 1, %s17
    $region7: #{tpu_custom_call.1} parent=1 // loop_footer_branch
      %16 = sbr.rel target = $region3
    $region8: #{tpu_custom_call.1} parent=1 // loop_exit
      _
    %307 = vsyncpa [#allocation4], 1
    %s308 = scalar_lea.sflag [#allocation4], 1
    %309 = vsyncpa %s308, 1
    %310 = vsyncpa [#allocation5], 1
    %s311 = scalar_lea.sflag [#allocation5], 1
    %312 = vsyncpa %s311, 1
    %313 = vsyncpa [#allocation6], 1
    %s314 = scalar_lea.sflag [#allocation6], 1
    %315 = vsyncpa %s314, 1
    %316 = vsyncpa [#allocation7], 1
    %s317 = scalar_lea.sflag [#allocation7], 1
    %318 = vsyncpa %s317, 1

</llo_original>
